<compile_context>
chip_gen: v6e
topology: v6e:2x2x1
jax: 0.10.0
libtpu: 0.0.40
codegen_flags: <defaults>
</compile_context>

<pallas_src>
import functools

import jax
import jax.numpy as jnp
from jax.experimental import pallas as pl
from jax.experimental.pallas import tpu as pltpu


def _round_down(x, mult):
    return (x // mult) * mult


def _cw_loss_kernel(p_ref, logits_ref, y_ref, cls_ref, c_ref, out_ref, ss_ref, *,
                    k, repeat, n_classes, tile_m, chunked, last_valid_cols):
    """One (group-tile, feature-tile) grid step.

    Grid axis 0 = perturbation-group tiles ("parallel"),
    Grid axis 1 = feature tiles of p ("arbitrary", innermost).
    ss_ref holds per-lane partial sums of p*p; the lane reduce, sqrt, logit
    margin and store all happen once per group tile on the last feature step.
    """
    t = pl.program_id(1)
    nt = pl.num_programs(1)

    @pl.when(t == 0)
    def _init():
        ss_ref[...] = jnp.zeros_like(ss_ref)

    def accumulate(p):
        if chunked:
            # Per-lane partial sums: full-width VPU mul + add, no lane reduce.
            acc = ss_ref[...]                                  # (TG, 128)
            for j in range(tile_m // 128):
                blk = p[:, j * 128:(j + 1) * 128]
                acc = acc + blk * blk
            ss_ref[...] = acc
        else:
            # Only used when there is a single feature step (tiny m).
            ss_ref[...] = ss_ref[...] + jnp.sum(p * p, axis=1, keepdims=True)

    p = p_ref[...].astype(jnp.float32)                         # (TG, TM)

    if last_valid_cols is None:
        accumulate(p)
    else:
        # Mask padded lanes only on the last (partial) feature tile.
        @pl.when(t < nt - 1)
        def _acc_full():
            accumulate(p)

        @pl.when(t == nt - 1)
        def _acc_masked():
            col = jax.lax.broadcasted_iota(jnp.int32, p.shape, 1)
            accumulate(jnp.where(col < last_valid_cols, p, 0.0))

    @pl.when(t == nt - 1)
    def _finalize():
        l2 = jnp.sqrt(jnp.sum(ss_ref[...], axis=1, keepdims=True))      # (TG, 1)

        logits = logits_ref[...].astype(jnp.float32)                    # (TG, R*C)
        hot = cls_ref[...] == y_ref[...]                                # (TG, R*C)
        c = c_ref[...].astype(jnp.float32)                              # (TG, 1)

        cols = []
        for r in range(repeat):
            sl = slice(r * n_classes, (r + 1) * n_classes)
            lg_r = logits[:, sl]                                        # (TG, C)
            hot_r = hot[:, sl]
            yth = jnp.sum(jnp.where(hot_r, lg_r, 0.0), axis=1, keepdims=True)
            oth = jnp.max(jnp.where(hot_r, -jnp.inf, lg_r), axis=1, keepdims=True)
            log_diff = jnp.maximum(yth - oth, -k)
            # repeat_interleave == broadcast of the per-group (TG, 1) vectors.
            cols.append(c * log_diff + l2)                              # (TG, 1)

        out_ref[...] = cols[0] if repeat == 1 else jnp.concatenate(cols, axis=1)


def cw_loss(p, logits, y, c_vec, k=0.0, *, tile_g=None, tile_m=None):
    """Pallas CWLoss forward. Returns loss of shape (n,), float32."""
    n, C = logits.shape
    n_p, m = p.shape
    assert n % n_p == 0, "logits batch must be a multiple of perturbation batch"
    repeat = n // n_p

    # ---- group-major, lane-dense input layouts (pure reshapes / tiny repeats)
    logits2 = logits.reshape(n_p, repeat * C)                           # (n_p, R*C)
    y2 = jnp.repeat(y.astype(jnp.int32).reshape(n_p, repeat), C, axis=1)  # (n_p, R*C)
    cls_row = jnp.tile(jnp.arange(C, dtype=jnp.int32), repeat).reshape(1, repeat * C)
    c2 = c_vec.astype(jnp.float32).reshape(n_p, 1)

    # ---- feature tile: multiple of 128 when tiling, else the full extent ----
    if tile_m is None:
        tile_m = m if m <= 2048 else 2048
    tile_m = min(tile_m, m)
    if tile_m < m:
        tile_m = max(128, _round_down(tile_m, 128))
        if tile_m >= m:
            tile_m = m

    # ---- group tile: keep >= 2 parallel grid steps for v7x megacore --------
    if tile_g is None:
        if n_p >= 16:
            tile_g = min(256, max(8, _round_down((n_p + 1) // 2, 8)))
        else:
            tile_g = n_p
    else:
        if tile_g >= n_p:
            tile_g = n_p
        else:
            tile_g = max(8, _round_down(tile_g, 8))
            if tile_g >= n_p:
                tile_g = n_p

    grid_g = pl.cdiv(n_p, tile_g)
    grid_m = pl.cdiv(m, tile_m)

    chunked = (tile_m % 128 == 0)
    lane_w = 128 if chunked else 1
    last_valid = None if (m % tile_m == 0) else m - (grid_m - 1) * tile_m

    kernel = functools.partial(
        _cw_loss_kernel, k=float(k), repeat=repeat, n_classes=C,
        tile_m=tile_m, chunked=chunked, last_valid_cols=last_valid)

    out = pl.pallas_call(
        kernel,
        out_shape=jax.ShapeDtypeStruct((n_p, repeat), jnp.float32),
        grid=(grid_g, grid_m),
        in_specs=[
            pl.BlockSpec((tile_g, tile_m), lambda g, t: (g, t)),        # p
            pl.BlockSpec((tile_g, repeat * C), lambda g, t: (g, 0)),    # logits
            pl.BlockSpec((tile_g, repeat * C), lambda g, t: (g, 0)),    # y (expanded)
            pl.BlockSpec((1, repeat * C), lambda g, t: (0, 0)),         # class ids
            pl.BlockSpec((tile_g, 1), lambda g, t: (g, 0)),             # c
        ],
        out_specs=pl.BlockSpec((tile_g, repeat), lambda g, t: (g, 0)),
        scratch_shapes=[pltpu.VMEM((tile_g, lane_w), jnp.float32)],
        compiler_params=pltpu.CompilerParams(
            dimension_semantics=("parallel", "arbitrary")),
    )(p, logits2, y2, cls_row, c2)
    return out.reshape(n)


def cw_loss_ref(p, logits, y, c_vec, k=0.0):
    """Plain-JAX reference mirroring the PyTorch forward."""
    n, C = logits.shape
    r = n // p.shape[0]
    l2 = jnp.repeat(jnp.linalg.norm(p.astype(jnp.float32), axis=1), r)
    onehot = jax.nn.one_hot(y, C, dtype=jnp.bool_)
    yth = jnp.sum(jnp.where(onehot, logits, 0.0), axis=1)
    max_other = jnp.max(jnp.where(onehot, -jnp.inf, logits), axis=1)
    log_diff = jnp.maximum(yth - max_other, -k)
    c = jnp.repeat(c_vec.astype(jnp.float32), r)
    return c * log_diff + l2


if __name__ == "__main__":
    key = jax.random.PRNGKey(0)
    k_p, k_logits, k_y = jax.random.split(key, 3)

    # Test 1: small shapes consistent with the module: CWLoss(classes=4, c=1,
    # k=0), jacobian-style duplication (logits batch = n_p * classes).
    classes = 4
    n_p = 2
    m = 32
    n = n_p * classes
    c_hp, k_hp = 1.0, 0.0

    p = jax.random.normal(k_p, (n_p, m), dtype=jnp.float32) * 0.1
    logits = jax.random.normal(k_logits, (n, classes), dtype=jnp.float32)
    y = jax.random.randint(k_y, (n,), 0, classes, dtype=jnp.int32)
    c_vec = jnp.full((n_p,), c_hp, dtype=jnp.float32)   # attach(): c expanded to n_p

    loss = cw_loss(p, logits, y, c_vec, k=k_hp)
    jax.block_until_ready(loss)
    ref = cw_loss_ref(p, logits, y, c_vec, k=k_hp)
    assert loss.shape == (n,) and loss.dtype == jnp.float32
    assert jnp.allclose(loss, ref, atol=1e-5, rtol=1e-5), (loss, ref)

    # Test 2: tiled/pipelined path — multi-step feature grid, chunked per-lane
    # accumulation, masked partial last feature tile (1000 % 256 != 0).
    k_p2, k_l2, k_y2 = jax.random.split(jax.random.PRNGKey(1), 3)
    classes2, n_p2, m2 = 10, 48, 1000
    n2 = n_p2 * classes2
    p2 = jax.random.normal(k_p2, (n_p2, m2), dtype=jnp.float32) * 0.05
    logits2 = jax.random.normal(k_l2, (n2, classes2), dtype=jnp.float32)
    y2 = jax.random.randint(k_y2, (n2,), 0, classes2, dtype=jnp.int32)
    c_vec2 = jnp.full((n_p2,), 0.5, dtype=jnp.float32)

    loss2 = cw_loss(p2, logits2, y2, c_vec2, k=0.2, tile_g=16, tile_m=256)
    jax.block_until_ready(loss2)
    ref2 = cw_loss_ref(p2, logits2, y2, c_vec2, k=0.2)
    assert jnp.allclose(loss2, ref2, atol=1e-4, rtol=1e-4), (loss2, ref2)

    # Test 3: default tile_g split (n_p >= 16 -> >= 2 parallel grid steps) with
    # a partial last group tile (20 % 8 != 0) and chunked single feature step.
    k_p3, k_l3, k_y3 = jax.random.split(jax.random.PRNGKey(2), 3)
    classes3, n_p3, m3 = 5, 20, 384
    n3 = n_p3 * classes3
    p3 = jax.random.normal(k_p3, (n_p3, m3), dtype=jnp.float32) * 0.05
    logits3 = jax.random.normal(k_l3, (n3, classes3), dtype=jnp.float32)
    y3 = jax.random.randint(k_y3, (n3,), 0, classes3, dtype=jnp.int32)
    c_vec3 = jnp.full((n_p3,), 2.0, dtype=jnp.float32)

    loss3 = cw_loss(p3, logits3, y3, c_vec3, k=0.1)
    jax.block_until_ready(loss3)
    ref3 = cw_loss_ref(p3, logits3, y3, c_vec3, k=0.1)
    assert jnp.allclose(loss3, ref3, atol=1e-4, rtol=1e-4), (loss3, ref3)

    print("KERNEL_OK")
</pallas_src>

<mosaic_0001>
module attributes {stable_mosaic.version = 11 : i64} {
  func.func @_cw_loss_kernel(%arg0: i32, %arg1: i32, %arg2: memref<2x32xf32, #tpu.memory_space<vmem>>, %arg3: memref<2x16xf32, #tpu.memory_space<vmem>>, %arg4: memref<2x16xi32, #tpu.memory_space<vmem>>, %arg5: memref<1x16xi32, #tpu.memory_space<vmem>>, %arg6: memref<2x1xf32, #tpu.memory_space<vmem>>, %arg7: memref<2x4xf32, #tpu.memory_space<vmem>>, %arg8: memref<2x1xf32, #tpu.memory_space<vmem>>) attributes {dimension_semantics = [#tpu.dimension_semantics<parallel>, #tpu.dimension_semantics<arbitrary>], iteration_bounds = array<i64: 1, 1>, scalar_prefetch = 0 : i64, scratch_operands = 1 : i64, tpu.core_type = #tpu.core_type<tc>, window_params = [{transform_indices = @transform_0, window_bounds = array<i64: 2, 32>}, {transform_indices = @transform_1, window_bounds = array<i64: 2, 16>}, {transform_indices = @transform_2, window_bounds = array<i64: 2, 16>}, {pipeline_mode = #tpu.pipeline_mode<synchronous>, transform_indices = @transform_3, window_bounds = array<i64: 1, 16>}, {transform_indices = @transform_4, window_bounds = array<i64: 2, 1>}, {transform_indices = @transform_5, window_bounds = array<i64: 2, 4>}]} {
    %c0_i32 = arith.constant 0 : i32
    %0 = arith.cmpi eq, %arg1, %c0_i32 : i32
    %1 = arith.extui %0 : i1 to i32
    %c0_i32_0 = arith.constant 0 : i32
    %2 = arith.cmpi ne, %1, %c0_i32_0 : i32
    scf.if %2 {
      %cst_8 = arith.constant 0.000000e+00 : f32
      %13 = vector.broadcast %cst_8 : f32 to vector<2x1xf32>
      %c0_9 = arith.constant 0 : index
      %c0_10 = arith.constant 0 : index
      %14 = vector.load %arg8[%c0_9, %c0_10] : memref<2x1xf32, #tpu.memory_space<vmem>>, vector<2x1xf32>
      tpu.vector_store %arg8[%c0_9, %c0_10], %13 {strides = array<i32>} : memref<2x1xf32, #tpu.memory_space<vmem>>, vector<2x1xf32>,
    } else {
    }
    %c0 = arith.constant 0 : index
    %c0_1 = arith.constant 0 : index
    %3 = vector.load %arg2[%c0, %c0_1] : memref<2x32xf32, #tpu.memory_space<vmem>>, vector<2x32xf32>
    %c0_2 = arith.constant 0 : index
    %c0_3 = arith.constant 0 : index
    %4 = vector.load %arg8[%c0_2, %c0_3] : memref<2x1xf32, #tpu.memory_space<vmem>>, vector<2x1xf32>
    %5 = arith.mulf %3, %3 : vector<2x32xf32>
    %cst = arith.constant dense<0.000000e+00> : vector<2xf32>
    %6 = vector.multi_reduction <add>, %5, %cst [1] : vector<2x32xf32> to vector<2xf32>
    %7 = vector.shape_cast %6 : vector<2xf32> to vector<2x1xf32>
    %8 = arith.addf %4, %7 : vector<2x1xf32>
    %c0_4 = arith.constant 0 : index
    %c0_5 = arith.constant 0 : index
    %9 = vector.load %arg8[%c0_4, %c0_5] : memref<2x1xf32, #tpu.memory_space<vmem>>, vector<2x1xf32>
    tpu.vector_store %arg8[%c0_4, %c0_5], %8 {strides = array<i32>} : memref<2x1xf32, #tpu.memory_space<vmem>>, vector<2x1xf32>,
    %c0_i32_6 = arith.constant 0 : i32
    %10 = arith.cmpi eq, %arg1, %c0_i32_6 : i32
    %11 = arith.extui %10 : i1 to i32
    %c0_i32_7 = arith.constant 0 : i32
    %12 = arith.cmpi ne, %11, %c0_i32_7 : i32
    scf.if %12 {
      %c0_8 = arith.constant 0 : index
      %c0_9 = arith.constant 0 : index
      %13 = vector.load %arg8[%c0_8, %c0_9] : memref<2x1xf32, #tpu.memory_space<vmem>>, vector<2x1xf32>
      %cst_10 = arith.constant dense<0.000000e+00> : vector<2xf32>
      %14 = vector.multi_reduction <add>, %13, %cst_10 [1] : vector<2x1xf32> to vector<2xf32>
      %15 = vector.shape_cast %14 : vector<2xf32> to vector<2x1xf32>
      %16 = math.sqrt %15 : vector<2x1xf32>
      %c0_11 = arith.constant 0 : index
      %c0_12 = arith.constant 0 : index
      %17 = vector.load %arg3[%c0_11, %c0_12] : memref<2x16xf32, #tpu.memory_space<vmem>>, vector<2x16xf32>
      %c0_13 = arith.constant 0 : index
      %c0_14 = arith.constant 0 : index
      %18 = vector.load %arg5[%c0_13, %c0_14] : memref<1x16xi32, #tpu.memory_space<vmem>>, vector<1x16xi32>
      %c0_15 = arith.constant 0 : index
      %c0_16 = arith.constant 0 : index
      %19 = vector.load %arg4[%c0_15, %c0_16] : memref<2x16xi32, #tpu.memory_space<vmem>>, vector<2x16xi32>
      %20 = vector.broadcast %18 : vector<1x16xi32> to vector<2x16xi32>
      %21 = arith.cmpi eq, %20, %19 : vector<2x16xi32>
      %c0_17 = arith.constant 0 : index
      %c0_18 = arith.constant 0 : index
      %22 = vector.load %arg6[%c0_17, %c0_18] : memref<2x1xf32, #tpu.memory_space<vmem>>, vector<2x1xf32>
      %23 = vector.extract_strided_slice %17 {offsets = [0, 0], sizes = [2, 4], strides = [1, 1]} : vector<2x16xf32> to vector<2x4xf32>
      %24 = vector.extract_strided_slice %21 {offsets = [0, 0], sizes = [2, 4], strides = [1, 1]} : vector<2x16xi1> to vector<2x4xi1>
      %cst_19 = arith.constant 0.000000e+00 : f32
      %25 = vector.broadcast %cst_19 : f32 to vector<2x4xf32>
      %26 = arith.select %24, %23, %25 : vector<2x4xi1>, vector<2x4xf32>
      %cst_20 = arith.constant dense<0.000000e+00> : vector<2xf32>
      %27 = vector.multi_reduction <add>, %26, %cst_20 [1] : vector<2x4xf32> to vector<2xf32>
      %28 = vector.shape_cast %27 : vector<2xf32> to vector<2x1xf32>
      %cst_21 = arith.constant 0xFF800000 : f32
      %29 = vector.broadcast %cst_21 : f32 to vector<2x4xf32>
      %30 = arith.select %24, %29, %23 : vector<2x4xi1>, vector<2x4xf32>
      %cst_22 = arith.constant dense<0xFF800000> : vector<2xf32>
      %31 = vector.multi_reduction <maximumf>, %30, %cst_22 [1] : vector<2x4xf32> to vector<2xf32>
      %32 = vector.shape_cast %31 : vector<2xf32> to vector<2x1xf32>
      %33 = arith.subf %28, %32 : vector<2x1xf32>
      %cst_23 = arith.constant -0.000000e+00 : f32
      %34 = vector.broadcast %cst_23 : f32 to vector<2x1xf32>
      %35 = arith.maximumf %33, %34 : vector<2x1xf32>
      %36 = arith.mulf %22, %35 : vector<2x1xf32>
      %37 = arith.addf %36, %16 : vector<2x1xf32>
      %38 = vector.extract_strided_slice %17 {offsets = [0, 4], sizes = [2, 4], strides = [1, 1]} : vector<2x16xf32> to vector<2x4xf32>
      %39 = vector.extract_strided_slice %21 {offsets = [0, 4], sizes = [2, 4], strides = [1, 1]} : vector<2x16xi1> to vector<2x4xi1>
      %cst_24 = arith.constant 0.000000e+00 : f32
      %40 = vector.broadcast %cst_24 : f32 to vector<2x4xf32>
      %41 = arith.select %39, %38, %40 : vector<2x4xi1>, vector<2x4xf32>
      %cst_25 = arith.constant dense<0.000000e+00> : vector<2xf32>
      %42 = vector.multi_reduction <add>, %41, %cst_25 [1] : vector<2x4xf32> to vector<2xf32>
      %43 = vector.shape_cast %42 : vector<2xf32> to vector<2x1xf32>
      %cst_26 = arith.constant 0xFF800000 : f32
      %44 = vector.broadcast %cst_26 : f32 to vector<2x4xf32>
      %45 = arith.select %39, %44, %38 : vector<2x4xi1>, vector<2x4xf32>
      %cst_27 = arith.constant dense<0xFF800000> : vector<2xf32>
      %46 = vector.multi_reduction <maximumf>, %45, %cst_27 [1] : vector<2x4xf32> to vector<2xf32>
      %47 = vector.shape_cast %46 : vector<2xf32> to vector<2x1xf32>
      %48 = arith.subf %43, %47 : vector<2x1xf32>
      %cst_28 = arith.constant -0.000000e+00 : f32
      %49 = vector.broadcast %cst_28 : f32 to vector<2x1xf32>
      %50 = arith.maximumf %48, %49 : vector<2x1xf32>
      %51 = arith.mulf %22, %50 : vector<2x1xf32>
      %52 = arith.addf %51, %16 : vector<2x1xf32>
      %53 = vector.extract_strided_slice %17 {offsets = [0, 8], sizes = [2, 4], strides = [1, 1]} : vector<2x16xf32> to vector<2x4xf32>
      %54 = vector.extract_strided_slice %21 {offsets = [0, 8], sizes = [2, 4], strides = [1, 1]} : vector<2x16xi1> to vector<2x4xi1>
      %cst_29 = arith.constant 0.000000e+00 : f32
      %55 = vector.broadcast %cst_29 : f32 to vector<2x4xf32>
      %56 = arith.select %54, %53, %55 : vector<2x4xi1>, vector<2x4xf32>
      %cst_30 = arith.constant dense<0.000000e+00> : vector<2xf32>
      %57 = vector.multi_reduction <add>, %56, %cst_30 [1] : vector<2x4xf32> to vector<2xf32>
      %58 = vector.shape_cast %57 : vector<2xf32> to vector<2x1xf32>
      %cst_31 = arith.constant 0xFF800000 : f32
      %59 = vector.broadcast %cst_31 : f32 to vector<2x4xf32>
      %60 = arith.select %54, %59, %53 : vector<2x4xi1>, vector<2x4xf32>
      %cst_32 = arith.constant dense<0xFF800000> : vector<2xf32>
      %61 = vector.multi_reduction <maximumf>, %60, %cst_32 [1] : vector<2x4xf32> to vector<2xf32>
      %62 = vector.shape_cast %61 : vector<2xf32> to vector<2x1xf32>
      %63 = arith.subf %58, %62 : vector<2x1xf32>
      %cst_33 = arith.constant -0.000000e+00 : f32
      %64 = vector.broadcast %cst_33 : f32 to vector<2x1xf32>
      %65 = arith.maximumf %63, %64 : vector<2x1xf32>
      %66 = arith.mulf %22, %65 : vector<2x1xf32>
      %67 = arith.addf %66, %16 : vector<2x1xf32>
      %68 = vector.extract_strided_slice %17 {offsets = [0, 12], sizes = [2, 4], strides = [1, 1]} : vector<2x16xf32> to vector<2x4xf32>
      %69 = vector.extract_strided_slice %21 {offsets = [0, 12], sizes = [2, 4], strides = [1, 1]} : vector<2x16xi1> to vector<2x4xi1>
      %cst_34 = arith.constant 0.000000e+00 : f32
      %70 = vector.broadcast %cst_34 : f32 to vector<2x4xf32>
      %71 = arith.select %69, %68, %70 : vector<2x4xi1>, vector<2x4xf32>
      %cst_35 = arith.constant dense<0.000000e+00> : vector<2xf32>
      %72 = vector.multi_reduction <add>, %71, %cst_35 [1] : vector<2x4xf32> to vector<2xf32>
      %73 = vector.shape_cast %72 : vector<2xf32> to vector<2x1xf32>
      %cst_36 = arith.constant 0xFF800000 : f32
      %74 = vector.broadcast %cst_36 : f32 to vector<2x4xf32>
      %75 = arith.select %69, %74, %68 : vector<2x4xi1>, vector<2x4xf32>
      %cst_37 = arith.constant dense<0xFF800000> : vector<2xf32>
      %76 = vector.multi_reduction <maximumf>, %75, %cst_37 [1] : vector<2x4xf32> to vector<2xf32>
      %77 = vector.shape_cast %76 : vector<2xf32> to vector<2x1xf32>
      %78 = arith.subf %73, %77 : vector<2x1xf32>
      %cst_38 = arith.constant -0.000000e+00 : f32
      %79 = vector.broadcast %cst_38 : f32 to vector<2x1xf32>
      %80 = arith.maximumf %78, %79 : vector<2x1xf32>
      %81 = arith.mulf %22, %80 : vector<2x1xf32>
      %82 = arith.addf %81, %16 : vector<2x1xf32>
      %83 = tpu.concatenate %37, %52, %67, %82 in 1 : vector<2x1xf32>, vector<2x1xf32>, vector<2x1xf32>, vector<2x1xf32> -> vector<2x4xf32>
      %c0_39 = arith.constant 0 : index
      %c0_40 = arith.constant 0 : index
      %84 = vector.load %arg7[%c0_39, %c0_40] : memref<2x4xf32, #tpu.memory_space<vmem>>, vector<2x4xf32>
      tpu.vector_store %arg7[%c0_39, %c0_40], %83 {strides = array<i32>} : memref<2x4xf32, #tpu.memory_space<vmem>>, vector<2x4xf32>,
    } else {
    }
    return
  }
  func.func @transform_0(%arg0: i32, %arg1: i32) -> (i32, i32) {
    %c0_i32 = arith.constant 0 : i32
    return %arg0, %arg1 : i32, i32
  }
  func.func @transform_1(%arg0: i32, %arg1: i32) -> (i32, i32) {
    %c0_i32 = arith.constant 0 : i32
    %c0_i32_0 = arith.constant 0 : i32
    return %arg0, %c0_i32 : i32, i32
  }
  func.func @transform_2(%arg0: i32, %arg1: i32) -> (i32, i32) {
    %c0_i32 = arith.constant 0 : i32
    %c0_i32_0 = arith.constant 0 : i32
    return %arg0, %c0_i32 : i32, i32
  }
  func.func @transform_3(%arg0: i32, %arg1: i32) -> (i32, i32) {
    %c0_i32 = arith.constant 0 : i32
    %c0_i32_0 = arith.constant 0 : i32
    %c0_i32_1 = arith.constant 0 : i32
    return %c0_i32, %c0_i32_0 : i32, i32
  }
  func.func @transform_4(%arg0: i32, %arg1: i32) -> (i32, i32) {
    %c0_i32 = arith.constant 0 : i32
    %c0_i32_0 = arith.constant 0 : i32
    return %arg0, %c0_i32 : i32, i32
  }
  func.func @transform_5(%arg0: i32, %arg1: i32) -> (i32, i32) {
    %c0_i32 = arith.constant 0 : i32
    %c0_i32_0 = arith.constant 0 : i32
    return %arg0, %c0_i32 : i32, i32
  }
}

</mosaic_0001>

<llo_original>
// kernel: tpu_custom_call.1
$region0: #{tpu_custom_call.1}
  #allocation0 [shape = 'u32[]', space=smem, size = 0x4, offset = 0x4, fixed_abs, tag = 'smem constant byte address 0x4 - core index']
  #allocation1 [shape = 'u32[144,128]{1,0:T(1,128)}', space=vmem, size = 0x12000, scoped, tag = 'internal scratch']
  #allocation2 [shape = 'f32[2,1]{1,0:T(2,128)}', space=vmem, size = 0x400, scoped, tag = 'scratch operand']
  %s0 = inlined_call_operand.vmem [shape: f32[2,32], index: 0, kind: input, shape index: {}]
  %s1 = inlined_call_operand.vmem [shape: f32[2,16], index: 1, kind: input, shape index: {}]
  %s2 = inlined_call_operand.vmem [shape: s32[2,16], index: 2, kind: input, shape index: {}]
  %s3 = inlined_call_operand.vmem [shape: s32[1,16], index: 3, kind: input, shape index: {}]
  %s4 = inlined_call_operand.vmem [shape: f32[2,1], index: 4, kind: input, shape index: {}]
  %s5 = inlined_call_operand.hbm [shape: f32[2,4], index: 5, kind: output, shape index: {}]
  %s6 = sld [smem:[#allocation0]]
  $region38: #{tpu_custom_call.1} parent=0
    _
  %s8 = ssub.s32 1, %s6
  %s9 = scalar_select 0, %s8, %s6
  $region1: #{tpu_custom_call.1} parent=0
    #allocation3 [shape = 'u8[1024]{0}', space=vmem, size = 0x400, scoped, tag = 'output window, operand 0, single buffered']
    #allocation4 [shape = 's32[1]{0}', space=sflag, size = 0x4, scoped, tag = 'scoped memory for tpu_custom_call.1']
    %10 = vsyncpa [#allocation4], 0
    // Predicated region
    $region2: #{tpu_custom_call.1} parent=1 // pred_check
      _
    $region3: #{tpu_custom_call.1} parent=1 // pred_check_branch
      %12 = sbr.rel (0) target = $region5
    $region4: #{tpu_custom_call.1} parent=1 // pred_region
      _
    $region5: #{tpu_custom_call.1} parent=1 // pred_fallthru
      _
    // Predicated region
    $region6: #{tpu_custom_call.1} parent=1 // pred_check
      _
    $region7: #{tpu_custom_call.1} parent=1 // pred_check_branch
      %14 = sbr.rel (0) target = $region9
    $region8: #{tpu_custom_call.1} parent=1 // pred_region
      _
    $region9: #{tpu_custom_call.1} parent=1 // pred_fallthru
      _
    // Predicated region
    $region10: #{tpu_custom_call.1} parent=1 // pred_check
      _
    $region11: #{tpu_custom_call.1} parent=1 // pred_check_branch
      %16 = sbr.rel (0) target = $region13
    $region12: #{tpu_custom_call.1} parent=1 // pred_region
      _
    $region13: #{tpu_custom_call.1} parent=1 // pred_fallthru
      _
    // Predicated region
    $region14: #{tpu_custom_call.1} parent=1 // pred_check
      _
    $region15: #{tpu_custom_call.1} parent=1 // pred_check_branch
      %18 = sbr.rel (0) target = $region17
    $region16: #{tpu_custom_call.1} parent=1 // pred_region
      _
    $region17: #{tpu_custom_call.1} parent=1 // pred_fallthru
      _
    // Predicated region
    $region18: #{tpu_custom_call.1} parent=1 // pred_check
      _
    $region19: #{tpu_custom_call.1} parent=1 // pred_check_branch
      %20 = sbr.rel (0) target = $region21
    $region20: #{tpu_custom_call.1} parent=1 // pred_region
      _
    $region21: #{tpu_custom_call.1} parent=1 // pred_fallthru
      _
    %p21 = scmp.eq.s32.totalorder 0, 0
    // Predicated region
    $region22: #{tpu_custom_call.1} parent=1 // pred_check
      %p22 = pneg %p21
    $region23: #{tpu_custom_call.1} parent=1 // pred_check_branch
      %24 = sbr.rel (%p22) target = $region25
    $region24: #{tpu_custom_call.1} parent=1 // pred_region
      %vm25 = vcmask 1024
      %26 = vst.msk [vmem:[#allocation2] sm:$0x3] %vm25, 0.0
    $region25: #{tpu_custom_call.1} parent=1 // pred_fallthru
      _
    %v27 = vld [vmem:[%s0] sm:$0x3]
    %v28 = vld [vmem:[#allocation2] sm:$0x3]
    %v29 = vmul.f32 %v27, %v27
    %vm30 = vcmask 254976
    %v31 = vsel %vm30, %v29, 0.0
    %32 = vadd.xlane.f32.xlu0 %v31
    %v33 = vpop.xlane.xlu0 %32
    %v34 = vadd.f32 %v28, %v33
    %vm35 = vcmask 1024
    %36 = vst.msk [vmem:[#allocation2] sm:$0x3] %vm35, %v34
    // Predicated region
    $region26: #{tpu_custom_call.1} parent=1 // pred_check
      %p37 = pneg %p21
    $region27: #{tpu_custom_call.1} parent=1 // pred_check_branch
      %39 = sbr.rel (%p37) target = $region29
    $region28: #{tpu_custom_call.1} parent=1 // pred_region
      %v40 = vld [vmem:[#allocation2] sm:$0x3]
      %v41 = vadd.f32 %v40, 0.0
      %v42 = vrsqrt.pop %v41
      %v43 = vmul.f32 %v41, %v42
      %vm44 = vcmp.eq.f32.partialorder %v41, inf
      %v45 = vsel %vm44, %v41, %v43
      %vm46 = vcmp.eq.f32.partialorder %v41, 0.0
      %v47 = vand.u32 %v41, 2147483648
      %v48 = vsel %vm46, %v47, %v45
      %v49 = vld [vmem:[%s1] sm:$0x3]
      %v50 = vld [vmem:[%s3] sm:$0x1]
      %v51 = vld [vmem:[%s2] sm:$0x3]
      %v52 = vlaneseq
      %v53 = vshrl.u32 %v52, 7
      %v54 = vsub.s32 0, %v53
      %v55 = vrot.slane %v50, %v54
      %vm56 = vcmp.eq.s32.totalorder %v55, %v51
      %v57 = vld [vmem:[%s4] sm:$0x3]
      %v58 = vsel %vm56, %v49, 0.0
      %vm59 = vcmask 25600
      %v60 = vsel %vm59, %v58, 0.0
      %61 = vadd.xlane.f32.xlu0 %v60
      %v62 = vpop.xlane.xlu0 %61
      %v63 = vsel %vm56, -inf, %v49
      %v64 = vsel %vm59, %v63, -inf
      %65 = vmax.xlane.f32.xlu0 %v64
      %v66 = vpop.xlane.xlu0 %65
      %v67 = vsub.f32 %v62, %v66
      %v68 = vmax.f32 %v67, -0.0
      %v69 = vmul.f32 %v57, %v68
      %v70 = vadd.f32 %v69, %v48
      %72 = vrot.lane.b32.xlu0 %v58, 124
      %v73 = vpop.permute.xlu0 %72
      %v75 = vsel %vm59, %v73, 0.0
      %76 = vadd.xlane.f32.xlu0 %v75
      %v77 = vpop.xlane.xlu0 %76
      %vm78 = vcmask 58400
      %v79 = vsel %vm78, %v63, -inf
      %80 = vmax.xlane.f32.xlu0 %v79
      %v81 = vpop.xlane.xlu0 %80
      %v82 = vsub.f32 %v77, %v81
      %v83 = vmax.f32 %v82, -0.0
      %v84 = vmul.f32 %v57, %v83
      %v85 = vadd.f32 %v84, %v48
      %86 = vrot.lane.b32.xlu0 %v58, 120
      %v87 = vpop.permute.xlu0 %86
      %v89 = vsel %vm59, %v87, 0.0
      %90 = vadd.xlane.f32.xlu0 %v89
      %v91 = vpop.xlane.xlu0 %90
      %vm92 = vcmask 91200
      %v93 = vsel %vm92, %v63, -inf
      %94 = vmax.xlane.f32.xlu0 %v93
      %v95 = vpop.xlane.xlu0 %94
      %v96 = vsub.f32 %v91, %v95
      %v97 = vmax.f32 %v96, -0.0
      %v98 = vmul.f32 %v57, %v97
      %v99 = vadd.f32 %v98, %v48
      %100 = vrot.lane.b32.xlu0 %v58, 116
      %v101 = vpop.permute.xlu0 %100
      %v103 = vsel %vm59, %v101, 0.0
      %104 = vadd.xlane.f32.xlu0 %v103
      %v105 = vpop.xlane.xlu0 %104
      %vm106 = vcmask 124000
      %v107 = vsel %vm106, %v63, -inf
      %108 = vmax.xlane.f32.xlu0 %v107
      %v109 = vpop.xlane.xlu0 %108
      %v110 = vsub.f32 %v105, %v109
      %v111 = vmax.f32 %v110, -0.0
      %v112 = vmul.f32 %v57, %v111
      %v113 = vadd.f32 %v112, %v48
      %115 = vrot.lane.b32.xlu0 %v85, 1
      %v116 = vpop.permute.xlu0 %115
      %119 = vrot.lane.b32.xlu0 %v99, 2
      %v120 = vpop.permute.xlu0 %119
      %123 = vrot.lane.b32.xlu0 %v113, 3
      %v124 = vpop.permute.xlu0 %123
      %vm126 = vcmask 7168
      %v127 = vsel %vm126, %v70, %v116
      %vm128 = vcmask 15360
      %v129 = vsel %vm128, %v127, %v120
      %vm130 = vcmask 23552
      %v131 = vsel %vm130, %v129, %v124
      %132 = vst.msk [vmem:[#allocation3] sm:$0x3] %vm59, %v131
    $region29: #{tpu_custom_call.1} parent=1 // pred_fallthru
      _
    // Predicated region
    $region30: #{tpu_custom_call.1} parent=1 // pred_check
      _
    $region31: #{tpu_custom_call.1} parent=1 // pred_check_branch
      %134 = sbr.rel (0) target = $region33
    $region32: #{tpu_custom_call.1} parent=1 // pred_region
      %s136 = ssub.s32 32, 32
      %137 = vsyncadd [#allocation4], %s136
      %s139 = sshll.u32 [#allocation3], 4
      %s140 = int_to_ptr.vmem [resolvable:$true] %s139
      %142 = dma.vmem_to_hbm [thread:$0]  %s140, 32, %s5, [#allocation4]
    $region33: #{tpu_custom_call.1} parent=1 // pred_fallthru
      _
    // Predicated region
    $region34: #{tpu_custom_call.1} parent=1 // pred_check
      _
    $region35: #{tpu_custom_call.1} parent=1 // pred_check_branch
      %144 = sbr.rel (0) target = $region37
    $region36: #{tpu_custom_call.1} parent=1 // pred_region
      %145 = dma.done [#allocation4], 32
    $region37: #{tpu_custom_call.1} parent=1 // pred_fallthru
      _
    %146 = vsyncpa [#allocation4], 1

</llo_original>
